<compile_context>
chip_gen: v6e
topology: v6e:2x2x1
jax: 0.10.0
libtpu: 0.0.40
codegen_flags: <defaults>
</compile_context>

<pallas_src>
import functools

import jax
import jax.numpy as jnp
from jax.experimental import pallas as pl
from jax.experimental.pallas import tpu as pltpu


def _label_smoothing_kernel(pred_ref, tgt_ref, loss_ref, *,
                            smooth_val, conf_minus_smooth):
    # pred_ref: (tile_n, C) input dtype; tgt_ref: (tile_n, 1) int32
    x = pred_ref[...].astype(jnp.float32)                      # (tile_n, C)
    tgt = tgt_ref[...]                                         # (tile_n, 1)

    # log-sum-exp along the class (lane) dim with the standard max shift.
    m = jnp.max(x, axis=-1, keepdims=True)                     # (tile_n, 1)
    lse = jnp.log(jnp.sum(jnp.exp(x - m), axis=-1, keepdims=True)) + m

    # Closed form (sum(true_dist) == 1):
    #   row_loss = lse - [smooth_val*sum(x) + (conf - smooth_val)*x[target]]
    # Fused into a single weighted cross-lane reduction:
    col = jax.lax.broadcasted_iota(jnp.int32, x.shape, 1)      # (tile_n, C)
    w = smooth_val * x + conf_minus_smooth * jnp.where(col == tgt, x, 0.0)
    loss_ref[...] = lse - jnp.sum(w, axis=-1, keepdims=True)   # (tile_n, 1)


def _vmem_capacity_bytes():
    """Best-effort query of per-core VMEM; conservative (v7x) fallback."""
    try:
        info = pltpu.get_tpu_info()
        cap = getattr(info, "vmem_capacity_bytes", None)
        if cap:
            return int(cap)
    except Exception:
        pass
    return 64 * 1024 * 1024


def _pick_vmem_limit_bytes():
    cap = _vmem_capacity_bytes()
    # ~70% of physical VMEM, capped at 56 MiB (v5e/v6e), floored at 16 MiB.
    #   v7x  (64 MiB)  -> ~44.8 MiB
    #   v5e/v6e (128 MiB) -> 56 MiB
    limit = int(cap * 0.70)
    return max(16 * 1024 * 1024, min(limit, 56 * 1024 * 1024))


def _pick_tile_n(n_rows, n_classes, in_itemsize, vmem_limit_bytes):
    """Largest sublane-aligned row tile that divides N and fits the live-VMEM budget.

    Live VMEM per grid step (per row of the tile):
      * 2 double-buffered input buffers in the input dtype : 2 * C * itemsize
      * ~5 tile-sized f32/i32 intermediates (x upcast, exp(x-m),
        iota, weighted copy, slack)                         : 5 * C * 4
      * target / output double-buffers (negligible)         : ~32 bytes
    """
    per_row_bytes = 2 * n_classes * in_itemsize + 5 * 4 * n_classes + 32
    budget_bytes = int(vmem_limit_bytes * 0.85)
    budget_rows = max(8, budget_bytes // max(1, per_row_bytes))

    cap = min(budget_rows, n_rows)
    # Keep at least 2 grid steps when everything would fit in one tile, so the
    # "parallel" axis can shard across v7x's two TensorCores.
    if cap >= n_rows and n_rows >= 16:
        cap = n_rows // 2
    if cap >= 8:
        cap = (cap // 8) * 8
    for t in range(cap, 0, -1):
        if n_rows % t == 0 and (t % 8 == 0 or t == n_rows):
            return t
    return n_rows


def label_smoothing_loss(pred, target, classes, smoothing=0.1, *, tile_n=None):
    """pred: (N, C) float (f32/bf16); target: (N,) int. Returns scalar mean loss."""
    N, C = pred.shape
    assert classes == C, "classes must match pred.shape[-1]"
    confidence = 1.0 - smoothing
    smooth_val = smoothing / (classes - 1)

    itemsize = jnp.dtype(pred.dtype).itemsize
    vmem_limit = _pick_vmem_limit_bytes()
    if tile_n is None:
        tile_n = _pick_tile_n(N, C, itemsize, vmem_limit)
    else:
        assert N % tile_n == 0, "tile_n must divide N"
        assert tile_n % 8 == 0 or tile_n == N, "tile_n must be sublane aligned"
    num_tiles = N // tile_n

    tgt2d = target.astype(jnp.int32).reshape(N, 1)

    kernel = functools.partial(
        _label_smoothing_kernel,
        smooth_val=float(smooth_val),
        conf_minus_smooth=float(confidence - smooth_val),
    )

    per_row = pl.pallas_call(
        kernel,
        out_shape=jax.ShapeDtypeStruct((N, 1), jnp.float32),
        grid_spec=pltpu.PrefetchScalarGridSpec(
            num_scalar_prefetch=0,
            grid=(num_tiles,),
            in_specs=[
                pl.BlockSpec((tile_n, C), lambda i: (i, 0)),
                pl.BlockSpec((tile_n, 1), lambda i: (i, 0)),
            ],
            out_specs=pl.BlockSpec((tile_n, 1), lambda i: (i, 0)),
        ),
        compiler_params=pltpu.CompilerParams(
            dimension_semantics=("parallel",),
            vmem_limit_bytes=vmem_limit,
        ),
        cost_estimate=pl.CostEstimate(
            flops=6 * N * C,
            transcendentals=N * C + N,
            bytes_accessed=N * C * itemsize + N * 4 + N * 4,
        ),
    )(pred, tgt2d)

    # Final mean (cross-tile reduction) in plain JAX — trivial output traffic.
    return jnp.mean(per_row)


def _reference(pred, target, classes, smoothing=0.1):
    confidence = 1.0 - smoothing
    log_probs = jax.nn.log_softmax(pred.astype(jnp.float32), axis=-1)
    smooth_val = smoothing / (classes - 1)
    true_dist = jnp.full_like(log_probs, smooth_val)
    true_dist = true_dist.at[jnp.arange(pred.shape[0]), target].set(confidence)
    return jnp.mean(jnp.sum(-true_dist * log_probs, axis=-1))


if __name__ == "__main__":
    key = jax.random.PRNGKey(0)
    k1, k2, k3, k4 = jax.random.split(key, 4)

    # Test 1: f32 logits, explicit tile -> multi-step grid (grid = 4).
    N1, C1 = 128, 32
    pred1 = jax.random.normal(k1, (N1, C1), dtype=jnp.float32)
    tgt1 = jax.random.randint(k2, (N1,), 0, C1, dtype=jnp.int32)
    loss1 = jax.block_until_ready(
        label_smoothing_loss(pred1, tgt1, classes=C1, smoothing=0.1, tile_n=32))
    ref1 = _reference(pred1, tgt1, classes=C1, smoothing=0.1)
    assert jnp.allclose(loss1, ref1, atol=1e-5, rtol=1e-4), (loss1, ref1)

    # Test 2: bf16 logits (no wrapper upcast), auto (generation-aware) tiling.
    N2, C2 = 64, 160
    pred2 = jax.random.normal(k3, (N2, C2), dtype=jnp.bfloat16)
    tgt2 = jax.random.randint(k4, (N2,), 0, C2, dtype=jnp.int32)
    loss2 = jax.block_until_ready(
        label_smoothing_loss(pred2, tgt2, classes=C2, smoothing=0.1))
    ref2 = _reference(pred2, tgt2, classes=C2, smoothing=0.1)
    assert jnp.allclose(loss2, ref2, atol=1e-3, rtol=1e-3), (loss2, ref2)

    print("KERNEL_OK")
</pallas_src>

<mosaic_0001>
module attributes {stable_mosaic.version = 11 : i64} {
  func.func @_label_smoothing_kernel(%arg0: i32, %arg1: memref<32x32xf32, #tpu.memory_space<vmem>>, %arg2: memref<32x1xi32, #tpu.memory_space<vmem>>, %arg3: memref<32x1xf32, #tpu.memory_space<vmem>>) attributes {dimension_semantics = [#tpu.dimension_semantics<parallel>], iteration_bounds = array<i64: 4>, scalar_prefetch = 0 : i64, scratch_operands = 0 : i64, tpu.core_type = #tpu.core_type<tc>, window_params = [{transform_indices = @transform_0, window_bounds = array<i64: 32, 32>}, {transform_indices = @transform_1, window_bounds = array<i64: 32, 1>}, {transform_indices = @transform_2, window_bounds = array<i64: 32, 1>}]} {
    %c0 = arith.constant 0 : index
    %c0_0 = arith.constant 0 : index
    %0 = vector.load %arg1[%c0, %c0_0] : memref<32x32xf32, #tpu.memory_space<vmem>>, vector<32x32xf32>
    %c0_1 = arith.constant 0 : index
    %c0_2 = arith.constant 0 : index
    %1 = vector.load %arg2[%c0_1, %c0_2] : memref<32x1xi32, #tpu.memory_space<vmem>>, vector<32x1xi32>
    %cst = arith.constant dense<0xFF800000> : vector<32xf32>
    %2 = vector.multi_reduction <maximumf>, %0, %cst [1] : vector<32x32xf32> to vector<32xf32>
    %3 = vector.shape_cast %2 : vector<32xf32> to vector<32x1xf32>
    %4 = vector.broadcast %3 : vector<32x1xf32> to vector<32x32xf32>
    %5 = arith.subf %0, %4 : vector<32x32xf32>
    %6 = math.exp %5 : vector<32x32xf32>
    %cst_3 = arith.constant dense<0.000000e+00> : vector<32xf32>
    %7 = vector.multi_reduction <add>, %6, %cst_3 [1] : vector<32x32xf32> to vector<32xf32>
    %8 = vector.shape_cast %7 : vector<32xf32> to vector<32x1xf32>
    %9 = math.log %8 : vector<32x1xf32>
    %10 = arith.addf %9, %3 : vector<32x1xf32>
    %11 = tpu.iota {dimensions = array<i32: 1>} : vector<32x32xi32>
    %cst_4 = arith.constant 0.0032258064 : f32
    %12 = vector.broadcast %cst_4 : f32 to vector<32x32xf32>
    %13 = arith.mulf %12, %0 : vector<32x32xf32>
    %14 = vector.broadcast %1 : vector<32x1xi32> to vector<32x32xi32>
    %15 = arith.cmpi eq, %11, %14 : vector<32x32xi32>
    %cst_5 = arith.constant 0.000000e+00 : f32
    %16 = vector.broadcast %cst_5 : f32 to vector<32x32xf32>
    %17 = arith.select %15, %0, %16 : vector<32x32xi1>, vector<32x32xf32>
    %cst_6 = arith.constant 0.896774172 : f32
    %18 = vector.broadcast %cst_6 : f32 to vector<32x32xf32>
    %19 = arith.mulf %18, %17 : vector<32x32xf32>
    %20 = arith.addf %13, %19 : vector<32x32xf32>
    %cst_7 = arith.constant dense<0.000000e+00> : vector<32xf32>
    %21 = vector.multi_reduction <add>, %20, %cst_7 [1] : vector<32x32xf32> to vector<32xf32>
    %22 = vector.shape_cast %21 : vector<32xf32> to vector<32x1xf32>
    %23 = arith.subf %10, %22 : vector<32x1xf32>
    %c0_8 = arith.constant 0 : index
    %c0_9 = arith.constant 0 : index
    %24 = vector.load %arg3[%c0_8, %c0_9] : memref<32x1xf32, #tpu.memory_space<vmem>>, vector<32x1xf32>
    tpu.vector_store %arg3[%c0_8, %c0_9], %23 {strides = array<i32>} : memref<32x1xf32, #tpu.memory_space<vmem>>, vector<32x1xf32>,
    return
  }
  func.func @transform_0(%arg0: i32) -> (i32, i32) {
    %c0_i32 = arith.constant 0 : i32
    %c0_i32_0 = arith.constant 0 : i32
    return %arg0, %c0_i32 : i32, i32
  }
  func.func @transform_1(%arg0: i32) -> (i32, i32) {
    %c0_i32 = arith.constant 0 : i32
    %c0_i32_0 = arith.constant 0 : i32
    return %arg0, %c0_i32 : i32, i32
  }
  func.func @transform_2(%arg0: i32) -> (i32, i32) {
    %c0_i32 = arith.constant 0 : i32
    %c0_i32_0 = arith.constant 0 : i32
    return %arg0, %c0_i32 : i32, i32
  }
}

</mosaic_0001>

<llo_original>
// kernel: tpu_custom_call.1
$region0: #{tpu_custom_call.1}
  #allocation0 [shape = 'u32[]', space=smem, size = 0x4, offset = 0x4, fixed_abs, tag = 'smem constant byte address 0x4 - core index']
  #allocation1 [shape = 'u32[144,128]{1,0:T(1,128)}', space=vmem, size = 0x12000, scoped, tag = 'internal scratch']
  %s0 = inlined_call_operand.vmem [shape: f32[128,32], index: 0, kind: input, shape index: {}]
  %s1 = inlined_call_operand.vmem [shape: s32[128,1], index: 1, kind: input, shape index: {}]
  %s2 = inlined_call_operand.vmem [shape: f32[128,1], index: 2, kind: output, shape index: {}]
  %s3 = sld [smem:[#allocation0]]
  $region41: #{tpu_custom_call.1} parent=0
    _
  %s5 = ssub.s32 1, %s3
  %s6 = scalar_select 0, %s5, %s3
  loop: start=0, step=1, limit=6
  $region2: #{tpu_custom_call.1} parent=0 // loop_pre_header
    _
  $region3: #{tpu_custom_call.1} parent=0 // loop_header
    %s8 = sphi 0, %s12
    %p9 = scmp.ge.s32.totalorder %s8, 6
    %s18 = sphi 0, %s20
    %s21 = sphi 0, %s18
    %s22 = sphi 0, %s21
    %s38 = sphi 0, %s22
    %s44 = sphi 0, %s46
    %s47 = sphi 0, %s44
    %s48 = sphi 0, %s47
    %s64 = sphi 0, %s48
    %s70 = sphi 0, %s72
    %s73 = sphi 0, %s70
    %s74 = sphi 0, %s73
    %s90 = sphi 0, %s74
  $region4: #{tpu_custom_call.1} parent=0 // loop_header_branch
    %11 = sbr.rel (%p9) target = $region8
  $region5: #{tpu_custom_call.1} parent=0 // loop_body
    %s13 = ssub.s32 %s8, 1
    %s14 = ssub.s32 %s8, 2
    %s15 = sadd.s32 %s8, 1
    %s16 = ssub.s32 %s8, %s15
    %p17 = scmp.eq.s32.totalorder %s16, 0
    %s19 = sadd.s32 %s18, 1
    %s20 = scalar_select %p17, %s18, %s19
    %p23 = pneg %p17
    %p24 = scmp.eq.s32.totalorder %s8, 3
    %p25 = por %p23, %p24
    %p26 = scmp.ne.s32.totalorder %s18, %s21
    %p27 = scmp.eq.s32.totalorder %s8, 0
    %p28 = por %p26, %p27
    %p29 = scmp.ne.s32.totalorder %s18, %s21
    %p30 = scmp.eq.s32.totalorder %s13, 3
    %p31 = por %p29, %p30
    %p32 = scmp.ne.s32.totalorder %s21, %s22
    %p33 = scmp.eq.s32.totalorder %s13, 0
    %p34 = por %p32, %p33
    %p35 = scmp.ne.s32.totalorder %s21, %s22
    %p36 = scmp.eq.s32.totalorder %s14, 3
    %p37 = por %p35, %p36
    %p39 = scmp.ne.s32.totalorder %s22, %s38
    %p40 = scmp.eq.s32.totalorder %s14, 0
    %p41 = por %p39, %p40
    %s42 = ssub.s32 %s8, %s15
    %p43 = scmp.eq.s32.totalorder %s42, 0
    %s45 = sadd.s32 %s44, 1
    %s46 = scalar_select %p43, %s44, %s45
    %p49 = pneg %p43
    %p50 = scmp.eq.s32.totalorder %s8, 3
    %p51 = por %p49, %p50
    %p52 = scmp.ne.s32.totalorder %s44, %s47
    %p53 = scmp.eq.s32.totalorder %s8, 0
    %p54 = por %p52, %p53
    %p55 = scmp.ne.s32.totalorder %s44, %s47
    %p56 = scmp.eq.s32.totalorder %s13, 3
    %p57 = por %p55, %p56
    %p58 = scmp.ne.s32.totalorder %s47, %s48
    %p59 = scmp.eq.s32.totalorder %s13, 0
    %p60 = por %p58, %p59
    %p61 = scmp.ne.s32.totalorder %s47, %s48
    %p62 = scmp.eq.s32.totalorder %s14, 3
    %p63 = por %p61, %p62
    %p65 = scmp.ne.s32.totalorder %s48, %s64
    %p66 = scmp.eq.s32.totalorder %s14, 0
    %p67 = por %p65, %p66
    %s68 = ssub.s32 %s8, %s15
    %p69 = scmp.eq.s32.totalorder %s68, 0
    %s71 = sadd.s32 %s70, 1
    %s72 = scalar_select %p69, %s70, %s71
    %p75 = pneg %p69
    %p76 = scmp.eq.s32.totalorder %s8, 3
    %p77 = por %p75, %p76
    %p78 = scmp.ne.s32.totalorder %s70, %s73
    %p79 = scmp.eq.s32.totalorder %s8, 0
    %p80 = por %p78, %p79
    %p81 = scmp.ne.s32.totalorder %s70, %s73
    %p82 = scmp.eq.s32.totalorder %s13, 3
    %p83 = por %p81, %p82
    %p84 = scmp.ne.s32.totalorder %s73, %s74
    %p85 = scmp.eq.s32.totalorder %s13, 0
    %p86 = por %p84, %p85
    %p87 = scmp.ne.s32.totalorder %s73, %s74
    %p88 = scmp.eq.s32.totalorder %s14, 3
    %p89 = por %p87, %p88
    %p91 = scmp.ne.s32.totalorder %s74, %s90
    %p92 = scmp.eq.s32.totalorder %s14, 0
    %p93 = por %p91, %p92
    %p94 = scmp.le.s32.totalorder 1, %s8
    %p95 = scmp.lt.s32.totalorder %s8, 5
    %p96 = pnand %p94, %p95
    %p97 = pneg %p96
    // Predicated region
    $region9: #{tpu_custom_call.1} parent=5 // pred_check
      _
    $region10: #{tpu_custom_call.1} parent=5 // pred_check_branch
      %99 = sbr.rel (%p96) target = $region12
    $region11: #{tpu_custom_call.1} parent=5 // pred_region
      %s100 = ssub.s32 %s8, 1
    $region12: #{tpu_custom_call.1} parent=5 // pred_fallthru
      _
    %p101 = scmp.lt.s32.totalorder %s8, 4
    // Predicated region
    $region13: #{tpu_custom_call.1} parent=5 // pred_check
      %p102 = pneg %p101
    $region14: #{tpu_custom_call.1} parent=5 // pred_check_branch
      %104 = sbr.rel (%p102) target = $region16
    $region15: #{tpu_custom_call.1} parent=5 // pred_region
      // Predicated region
      $region17: #{tpu_custom_call.1} parent=15 // pred_check
        %p105 = pneg %p28
      $region18: #{tpu_custom_call.1} parent=15 // pred_check_branch
        %107 = sbr.rel (%p105) target = $region20
      $region19: #{tpu_custom_call.1} parent=15 // pred_region
        %s108 = smul.u32 4, %s8
        %p109 = scmp.lt.s32.totalorder %s108, 15
        %s110 = scalar_select %p109, %s108, 15
        %s111 = smul.addr %s110, 8
        %s112 = scalar_lea.vmem %s0, %s111
        %s113 = smul.u32 4, %s8
      $region20: #{tpu_custom_call.1} parent=15 // pred_fallthru
        _
      // Predicated region
      $region21: #{tpu_custom_call.1} parent=15 // pred_check
        %p114 = pneg %p54
      $region22: #{tpu_custom_call.1} parent=15 // pred_check_branch
        %116 = sbr.rel (%p114) target = $region24
      $region23: #{tpu_custom_call.1} parent=15 // pred_region
        %s117 = smul.u32 4, %s8
        %p118 = scmp.lt.s32.totalorder %s117, 15
        %s119 = scalar_select %p118, %s117, 15
        %s120 = smul.addr %s119, 8
        %s121 = scalar_lea.vmem %s1, %s120
        %s122 = smul.u32 4, %s8
      $region24: #{tpu_custom_call.1} parent=15 // pred_fallthru
        _
    $region16: #{tpu_custom_call.1} parent=5 // pred_fallthru
      _
    %p123 = scmp.le.s32.totalorder 1, %s8
    %p124 = scmp.lt.s32.totalorder %s8, 5
    %p125 = pnand %p123, %p124
    %p126 = pneg %p125
    // Predicated region
    $region25: #{tpu_custom_call.1} parent=5 // pred_check
      _
    $region26: #{tpu_custom_call.1} parent=5 // pred_check_branch
      %128 = sbr.rel (%p125) target = $region28
    $region27: #{tpu_custom_call.1} parent=5 // pred_region
      %s129 = ssub.s32 %s8, 1
      %s130 = smul.u32 4, %s13
      %p131 = scmp.lt.s32.totalorder %s130, 15
      %s132 = scalar_select %p131, %s130, 15
      %s133 = smul.addr %s132, 8
      %s134 = scalar_lea.vmem %s0, %s133
      %p135 = pneg %p34
      %p136 = pneg %p31
      %s137 = smul.u32 4, %s13
      %p138 = scmp.lt.s32.totalorder %s137, 15
      %s139 = scalar_select %p138, %s137, 15
      %s140 = smul.addr %s139, 8
      %s141 = scalar_lea.vmem %s1, %s140
      %p142 = pneg %p60
      %p143 = pneg %p57
      %p144 = pneg %p86
      %p145 = pneg %p83
      %s146 = smul.u32 4, %s13
      %p147 = scmp.lt.s32.totalorder %s146, 15
      %s148 = scalar_select %p147, %s146, 15
      %s149 = smul.addr %s148, 8
      %s150 = scalar_lea.vmem %s2, %s149
      %s151 = smul.u32 4, %s13
      %p152 = scmp.lt.s32.totalorder %s151, 15
      %s153 = scalar_select %p152, %s151, 15
      %s154 = smul.addr %s153, 8
      %s155 = scalar_lea.vmem %s0, %s154
      %s156 = smul.u32 4, %s13
      %s157 = smul.u32 4, %s13
      %p158 = scmp.lt.s32.totalorder %s157, 15
      %s159 = scalar_select %p158, %s157, 15
      %s160 = smul.addr %s159, 8
      %s161 = scalar_lea.vmem %s1, %s160
      %s162 = smul.u32 4, %s13
      %s163 = smul.u32 4, %s13
      %p164 = scmp.lt.s32.totalorder %s163, 15
      %s165 = scalar_select %p164, %s163, 15
      %s166 = smul.addr %s165, 8
      %s167 = scalar_lea.vmem %s2, %s166
      %s168 = smul.u32 4, %s13
      %v169 = vld [vmem:[%s155] sm:$0xff]
      %v170 = vld [vmem:[%s155 + $0x8] sm:$0xff]
      %v171 = vld [vmem:[%s155 + $0x10] sm:$0xff]
      %v172 = vld [vmem:[%s155 + $0x18] sm:$0xff]
      %v173 = vld [vmem:[%s161] sm:$0xff]
      %v174 = vld [vmem:[%s161 + $0x8] sm:$0xff]
      %v175 = vld [vmem:[%s161 + $0x10] sm:$0xff]
      %v176 = vld [vmem:[%s161 + $0x18] sm:$0xff]
      %vm177 = vcmask 261120
      %v178 = vsel %vm177, %v169, -inf
      %179 = vmax.xlane.f32.xlu0 %v178
      %v180 = vpop.xlane.xlu0 %179
      %v181 = vsel %vm177, %v170, -inf
      %182 = vmax.xlane.f32.xlu0 %v181
      %v183 = vpop.xlane.xlu0 %182
      %v184 = vsel %vm177, %v171, -inf
      %185 = vmax.xlane.f32.xlu0 %v184
      %v186 = vpop.xlane.xlu0 %185
      %v187 = vsel %vm177, %v172, -inf
      %188 = vmax.xlane.f32.xlu0 %v187
      %v189 = vpop.xlane.xlu0 %188
      %v190 = vsub.f32 %v169, %v180
      %v191 = vsub.f32 %v170, %v183
      %v192 = vsub.f32 %v171, %v186
      %v193 = vsub.f32 %v172, %v189
      %v194 = vmul.f32 %v190, 1.442695
      %v195 = vpow.pop %v194
      %v196 = vmul.f32 %v191, 1.442695
      %v197 = vpow.pop %v196
      %v198 = vmul.f32 %v192, 1.442695
      %v199 = vpow.pop %v198
      %v200 = vmul.f32 %v193, 1.442695
      %v201 = vpow.pop %v200
      %v202 = vsel %vm177, %v195, 0.0
      %203 = vadd.xlane.f32.xlu0 %v202
      %v204 = vpop.xlane.xlu0 %203
      %v205 = vsel %vm177, %v197, 0.0
      %206 = vadd.xlane.f32.xlu0 %v205
      %v207 = vpop.xlane.xlu0 %206
      %v208 = vsel %vm177, %v199, 0.0
      %209 = vadd.xlane.f32.xlu0 %v208
      %v210 = vpop.xlane.xlu0 %209
      %v211 = vsel %vm177, %v201, 0.0
      %212 = vadd.xlane.f32.xlu0 %v211
      %v213 = vpop.xlane.xlu0 %212
      %v214 = vlog2.pop %v204
      %v215 = vmul.f32 %v214, 0.6931472
      %v216 = vlog2.pop %v207
      %v217 = vmul.f32 %v216, 0.6931472
      %v218 = vlog2.pop %v210
      %v219 = vmul.f32 %v218, 0.6931472
      %v220 = vlog2.pop %v213
      %v221 = vmul.f32 %v220, 0.6931472
      %v222 = vadd.f32 %v215, %v180
      %v223 = vadd.f32 %v217, %v183
      %v224 = vadd.f32 %v219, %v186
      %v225 = vadd.f32 %v221, %v189
      %v226 = vlaneseq
      %v227 = vand.u32 %v226, 127
      %v228 = vmul.f32 %v169, 0.0032258064
      %v229 = vmul.f32 %v170, 0.0032258064
      %v230 = vmul.f32 %v171, 0.0032258064
      %v231 = vmul.f32 %v172, 0.0032258064
      %232 = vset.pattern.permute.xlu0 0
      %233 = vperm.xlu0 %232, %v173
      %v234 = vpop.permute.xlu0 %233
      %235 = vset.pattern.permute.xlu0 0
      %236 = vperm.xlu0 %235, %v174
      %v237 = vpop.permute.xlu0 %236
      %238 = vset.pattern.permute.xlu0 0
      %239 = vperm.xlu0 %238, %v175
      %v240 = vpop.permute.xlu0 %239
      %241 = vset.pattern.permute.xlu0 0
      %242 = vperm.xlu0 %241, %v176
      %v243 = vpop.permute.xlu0 %242
      %vm244 = vcmp.eq.s32.totalorder %v227, %v234
      %vm245 = vcmp.eq.s32.totalorder %v227, %v237
      %vm246 = vcmp.eq.s32.totalorder %v227, %v240
      %vm247 = vcmp.eq.s32.totalorder %v227, %v243
      %v248 = vsel %vm244, %v169, 0.0
      %v249 = vsel %vm245, %v170, 0.0
      %v250 = vsel %vm246, %v171, 0.0
      %v251 = vsel %vm247, %v172, 0.0
      %v252 = vmul.f32 %v248, 0.8967742
      %v253 = vmul.f32 %v249, 0.8967742
      %v254 = vmul.f32 %v250, 0.8967742
      %v255 = vmul.f32 %v251, 0.8967742
      %v256 = vadd.f32 %v228, %v252
      %v257 = vadd.f32 %v229, %v253
      %v258 = vadd.f32 %v230, %v254
      %v259 = vadd.f32 %v231, %v255
      %v260 = vsel %vm177, %v256, 0.0
      %261 = vadd.xlane.f32.xlu0 %v260
      %v262 = vpop.xlane.xlu0 %261
      %v263 = vsel %vm177, %v257, 0.0
      %264 = vadd.xlane.f32.xlu0 %v263
      %v265 = vpop.xlane.xlu0 %264
      %v266 = vsel %vm177, %v258, 0.0
      %267 = vadd.xlane.f32.xlu0 %v266
      %v268 = vpop.xlane.xlu0 %267
      %v269 = vsel %vm177, %v259, 0.0
      %270 = vadd.xlane.f32.xlu0 %v269
      %v271 = vpop.xlane.xlu0 %270
      %v272 = vsub.f32 %v222, %v262
      %v273 = vsub.f32 %v223, %v265
      %v274 = vsub.f32 %v224, %v268
      %v275 = vsub.f32 %v225, %v271
      %vm276 = vcmask 7168
      %277 = vst.msk [vmem:[%s167] sm:$0xff] %vm276, %v272
      %278 = vst.msk [vmem:[%s167 + $0x8] sm:$0xff] %vm276, %v273
      %279 = vst.msk [vmem:[%s167 + $0x10] sm:$0xff] %vm276, %v274
      %280 = vst.msk [vmem:[%s167 + $0x18] sm:$0xff] %vm276, %v275
      %s281 = smul.u32 4, %s13
      %p282 = scmp.lt.s32.totalorder %s281, 15
      %s283 = scalar_select %p282, %s281, 15
      %s284 = smul.addr %s283, 8
      %s285 = scalar_lea.vmem %s2, %s284
      // Predicated region
      $region29: #{tpu_custom_call.1} parent=27 // pred_check
        %p286 = pneg %p83
      $region30: #{tpu_custom_call.1} parent=27 // pred_check_branch
        %288 = sbr.rel (%p286) target = $region32
      $region31: #{tpu_custom_call.1} parent=27 // pred_region
        %s289 = smul.u32 4, %s13
      $region32: #{tpu_custom_call.1} parent=27 // pred_fallthru
        _
    $region28: #{tpu_custom_call.1} parent=5 // pred_fallthru
      _
    %p290 = scmp.le.s32.totalorder 2, %s8
    // Predicated region
    $region33: #{tpu_custom_call.1} parent=5 // pred_check
      %p291 = pneg %p290
    $region34: #{tpu_custom_call.1} parent=5 // pred_check_branch
      %293 = sbr.rel (%p291) target = $region36
    $region35: #{tpu_custom_call.1} parent=5 // pred_region
      %s294 = ssub.s32 %s8, 2
      // Predicated region
      $region37: #{tpu_custom_call.1} parent=35 // pred_check
        %p295 = pneg %p89
      $region38: #{tpu_custom_call.1} parent=35 // pred_check_branch
        %297 = sbr.rel (%p295) target = $region40
      $region39: #{tpu_custom_call.1} parent=35 // pred_region
        %s298 = smul.u32 4, %s14
        %p299 = scmp.lt.s32.totalorder %s298, 15
        %s300 = scalar_select %p299, %s298, 15
        %s301 = smul.addr %s300, 8
        %s302 = scalar_lea.vmem %s2, %s301
      $region40: #{tpu_custom_call.1} parent=35 // pred_fallthru
        _
    $region36: #{tpu_custom_call.1} parent=5 // pred_fallthru
      _
  $region6: #{tpu_custom_call.1} parent=0 // loop_footer
    %s12 = sadd.s32 1, %s8
  $region7: #{tpu_custom_call.1} parent=0 // loop_footer_branch
    %7 = sbr.rel target = $region3
  $region8: #{tpu_custom_call.1} parent=0 // loop_exit
    _

</llo_original>
